<compile_context>
chip_gen: v6e
topology: v6e:2x2x1
jax: 0.10.0
libtpu: 0.0.40
codegen_flags: <defaults>
</compile_context>

<pallas_src>
import functools
import math

import jax
import jax.numpy as jnp
from jax.experimental import pallas as pl
from jax.experimental.pallas import tpu as pltpu


def _drop_path_kernel(keep_ref, x_ref, o_ref, *, inv_keep_prob):
    # keep_ref: (B,) int32 in SMEM (scalar prefetch): 1 = keep sample, 0 = drop.
    # x_ref / o_ref: (1, tile_rows, lane) tile of one sample.
    b = pl.program_id(0)
    scale = keep_ref[b].astype(jnp.float32) * jnp.float32(inv_keep_prob)
    x = x_ref[...].astype(jnp.float32)
    o_ref[...] = (x * scale).astype(o_ref.dtype)


def _choose_layout(n):
    """Fold a flattened per-sample length n into a lane-dense (rows, lane)."""
    lane = None
    for cand in (512, 256, 128):
        if n % cand == 0:
            lane = cand
            break
    if lane is None:
        # Last dim == full array dim is always a legal block; lane-density is
        # only a perf concern for odd shapes.
        lane, rows = n, 1
    else:
        rows = n // lane
    tile_rows = rows
    for cand in (512, 256, 128, 64, 32, 16, 8):  # multiples of 8, cap 512
        if rows % cand == 0:
            tile_rows = cand
            break
    return lane, rows, tile_rows


@functools.partial(jax.jit, static_argnames=("drop_prob",))
def _drop_path_train(x, keep_i32, *, drop_prob):
    keep_prob = 1.0 - float(drop_prob)
    B = x.shape[0]
    n = math.prod(x.shape[1:]) if x.ndim > 1 else 1
    lane, rows, tile_rows = _choose_layout(n)

    xr = x.reshape(B, rows, lane)

    tile_bytes = tile_rows * lane * jnp.dtype(x.dtype).itemsize
    # in + out, double-buffered, plus headroom; capped for v7x (64 MiB VMEM).
    vmem_limit = int(min(48 * 1024 * 1024, max(8 * tile_bytes, 4 * 1024 * 1024)))

    out = pl.pallas_call(
        functools.partial(_drop_path_kernel, inv_keep_prob=1.0 / keep_prob),
        out_shape=jax.ShapeDtypeStruct((B, rows, lane), x.dtype),
        grid_spec=pltpu.PrefetchScalarGridSpec(
            num_scalar_prefetch=1,
            grid=(B, rows // tile_rows),
            in_specs=[
                pl.BlockSpec((1, tile_rows, lane), lambda b, i, keep: (b, i, 0)),
            ],
            out_specs=pl.BlockSpec((1, tile_rows, lane), lambda b, i, keep: (b, i, 0)),
        ),
        compiler_params=pltpu.CompilerParams(
            dimension_semantics=("parallel", "parallel"),
            vmem_limit_bytes=vmem_limit,
        ),
    )(keep_i32, xr)

    return out.reshape(x.shape)


def drop_path(x, drop_prob=0.0, *, key=None, training=True):
    """Forward pass of DropPath.  Identity when drop_prob == 0 or not training."""
    if drop_prob == 0.0 or not training:
        return x  # same Python-level early-out as the nn.Module
    if key is None:
        key = jax.random.PRNGKey(0)
    keep_prob = 1.0 - float(drop_prob)
    B = x.shape[0]
    # Per-sample Bernoulli(keep_prob) draw: floor(keep_prob + U[0,1)).
    u = jax.random.uniform(key, (B,), dtype=jnp.float32)
    keep_i32 = jnp.floor(jnp.float32(keep_prob) + u).astype(jnp.int32)
    return _drop_path_train(x, keep_i32, drop_prob=float(drop_prob))


if __name__ == "__main__":
    # Small shapes consistent with the transformer module: batch=2, seq=8, embed=32
    B, S, E = 2, 8, 32
    key = jax.random.PRNGKey(0)
    kx, kd = jax.random.split(key)
    x = jax.random.normal(kx, (B, S, E), dtype=jnp.float32)

    # 1) identity paths (p == 0, or eval mode)
    y_eval = drop_path(x, drop_prob=0.3, training=False)
    y_p0 = drop_path(x, drop_prob=0.0, training=True)
    assert jnp.array_equal(y_eval, x)
    assert jnp.array_equal(y_p0, x)

    # 2) training path with drop_prob > 0 (the Pallas kernel)
    drop_prob = 0.25
    keep_prob = 1.0 - drop_prob
    y = drop_path(x, drop_prob=drop_prob, key=kd, training=True)
    y = jax.block_until_ready(y)
    assert y.shape == x.shape and y.dtype == x.dtype

    # every sample is either fully dropped (all zeros) or scaled by 1/keep_prob
    for b in range(B):
        dropped = bool(jnp.max(jnp.abs(y[b])) == 0.0)
        kept = bool(jnp.allclose(y[b], x[b] / keep_prob, atol=1e-5, rtol=1e-5))
        assert dropped or kept, f"sample {b} is neither fully kept nor fully dropped"

    # deterministic for a fixed key (also checks all tiles of a sample agree)
    y2 = jax.block_until_ready(
        drop_path(x, drop_prob=drop_prob, key=kd, training=True)
    )
    assert jnp.allclose(y, y2)

    # cross-check against a pure-JAX reference with the same mask
    u = jax.random.uniform(kd, (B,), dtype=jnp.float32)
    mask = jnp.floor(jnp.float32(keep_prob) + u).reshape(B, 1, 1)
    ref = x / keep_prob * mask
    assert jnp.allclose(y, ref, atol=1e-5, rtol=1e-5)

    print("KERNEL_OK")
</pallas_src>

<mosaic_0001>
module attributes {stable_mosaic.version = 11 : i64} {
  func.func @_drop_path_kernel(%arg0: i32, %arg1: i32, %arg2: memref<2xi32, #tpu.memory_space<smem>>, %arg3: memref<1x1x256xf32, #tpu.memory_space<vmem>>, %arg4: memref<1x1x256xf32, #tpu.memory_space<vmem>>) attributes {dimension_semantics = [#tpu.dimension_semantics<parallel>, #tpu.dimension_semantics<parallel>], iteration_bounds = array<i64: 2, 1>, scalar_prefetch = 1 : i64, scratch_operands = 0 : i64, tpu.core_type = #tpu.core_type<tc>, window_params = [{transform_indices = @transform_0, window_bounds = array<i64: 1, 1, 256>}, {transform_indices = @transform_1, window_bounds = array<i64: 1, 1, 256>}]} {
    %0 = arith.index_cast %arg0 : i32 to index
    %1 = memref.load %arg2[%0] : memref<2xi32, #tpu.memory_space<smem>>
    %2 = arith.sitofp %1 : i32 to f32
    %cst = arith.constant 1.33333337 : f32
    %3 = arith.mulf %2, %cst : f32
    %c0 = arith.constant 0 : index
    %c0_0 = arith.constant 0 : index
    %c0_1 = arith.constant 0 : index
    %4 = vector.load %arg3[%c0, %c0_0, %c0_1] : memref<1x1x256xf32, #tpu.memory_space<vmem>>, vector<1x1x256xf32>
    %5 = vector.broadcast %3 : f32 to vector<1x1x256xf32>
    %6 = arith.mulf %4, %5 : vector<1x1x256xf32>
    %c0_2 = arith.constant 0 : index
    %c0_3 = arith.constant 0 : index
    %c0_4 = arith.constant 0 : index
    %7 = vector.load %arg4[%c0_2, %c0_3, %c0_4] : memref<1x1x256xf32, #tpu.memory_space<vmem>>, vector<1x1x256xf32>
    tpu.vector_store %arg4[%c0_2, %c0_3, %c0_4], %6 {strides = array<i32>} : memref<1x1x256xf32, #tpu.memory_space<vmem>>, vector<1x1x256xf32>,
    return
  }
  func.func @transform_0(%arg0: i32, %arg1: i32, %arg2: memref<2xi32, #tpu.memory_space<smem>>) -> (i32, i32, i32) {
    %c0_i32 = arith.constant 0 : i32
    %c0_i32_0 = arith.constant 0 : i32
    return %arg0, %arg1, %c0_i32 : i32, i32, i32
  }
  func.func @transform_1(%arg0: i32, %arg1: i32, %arg2: memref<2xi32, #tpu.memory_space<smem>>) -> (i32, i32, i32) {
    %c0_i32 = arith.constant 0 : i32
    %c0_i32_0 = arith.constant 0 : i32
    return %arg0, %arg1, %c0_i32 : i32, i32, i32
  }
}

</mosaic_0001>

<llo_original>
// kernel: _drop_path_train.1
$region0: #{_drop_path_train.1}
  #allocation0 [shape = 'u32[]', space=smem, size = 0x4, offset = 0x4, fixed_abs, tag = 'smem constant byte address 0x4 - core index']
  #allocation1 [shape = 'u32[144,128]{1,0:T(1,128)}', space=vmem, size = 0x12000, scoped, tag = 'internal scratch']
  #allocation2 [shape = 's32[1]{0}', space=sflag, size = 0x4, scoped, tag = 'scoped memory for _drop_path_train.1']
  #allocation3 [shape = 'u8[512]{0}', space=smem, size = 0x200, scoped, tag = 'prefetched SMEM operand 0']
  %s0 = inlined_call_operand.vmem [shape: s32[2], index: 0, kind: input, shape index: {}]
  %s1 = inlined_call_operand.vmem [shape: f32[2,1,256], index: 1, kind: input, shape index: {}]
  %s2 = inlined_call_operand.vmem [shape: f32[2,1,256], index: 2, kind: output, shape index: {}]
  %s3 = sld [smem:[#allocation0]]
  $region37: #{_drop_path_train.1} parent=0
    _
  %s5 = ssub.s32 1, %s3
  %s6 = scalar_select 0, %s5, %s3
  %s7 = sshll.u32 %s0, 4
  %s8 = int_to_ptr.vmem [resolvable:$true] %s7
  %10 = dma.vmem_to_smem %s8, 16, [#allocation3], [#allocation2]
  %11 = dma.done [#allocation2], 16
  %12 = sfence
  loop: start=0, step=1, limit=4
  $region2: #{_drop_path_train.1} parent=0 // loop_pre_header
    _
  $region3: #{_drop_path_train.1} parent=0 // loop_header
    %s14 = sphi 0, %s18
    %p15 = scmp.ge.s32.totalorder %s14, 4
    %s21 = sphi 0, %s33
    %s22 = sphi 0, %s29
    %s23 = sphi 0, %s21
    %s24 = sphi 0, %s22
    %s25 = sphi 0, %s23
    %s26 = sphi 0, %s24
    %s38 = sphi 0, %s40
    %s41 = sphi 0, %s38
    %s42 = sphi 0, %s41
    %s58 = sphi 0, %s42
    %s66 = sphi 0, %s68
    %s69 = sphi 0, %s66
    %s70 = sphi 0, %s69
    %s86 = sphi 0, %s70
  $region4: #{_drop_path_train.1} parent=0 // loop_header_branch
    %17 = sbr.rel (%p15) target = $region8
  $region5: #{_drop_path_train.1} parent=0 // loop_body
    %s19 = ssub.s32 %s14, 1
    %s20 = ssub.s32 %s14, 2
    %s27 = sadd.s32 1, %s22
    %p28 = scmp.ge.s32.totalorder %s27, 1
    %s29 = scalar_select %p28, 0, %s27
    %s30 = sadd.s32 1, %s21
    %s31 = scalar_select %p28, %s30, %s21
    %p32 = scmp.ge.s32.totalorder %s31, 2
    %s33 = scalar_select %p32, 0, %s31
    %s34 = ssub.s32 %s21, %s33
    %s35 = ssub.s32 %s22, %s29
    %s36 = sor.u32 %s34, %s35
    %p37 = scmp.eq.s32.totalorder %s36, 0
    %s39 = sadd.s32 %s38, 1
    %s40 = scalar_select %p37, %s38, %s39
    %p43 = pneg %p37
    %p44 = scmp.eq.s32.totalorder %s14, 1
    %p45 = por %p43, %p44
    %p46 = scmp.ne.s32.totalorder %s38, %s41
    %p47 = scmp.eq.s32.totalorder %s14, 0
    %p48 = por %p46, %p47
    %p49 = scmp.ne.s32.totalorder %s38, %s41
    %p50 = scmp.eq.s32.totalorder %s19, 1
    %p51 = por %p49, %p50
    %p52 = scmp.ne.s32.totalorder %s41, %s42
    %p53 = scmp.eq.s32.totalorder %s19, 0
    %p54 = por %p52, %p53
    %p55 = scmp.ne.s32.totalorder %s41, %s42
    %p56 = scmp.eq.s32.totalorder %s20, 1
    %p57 = por %p55, %p56
    %p59 = scmp.ne.s32.totalorder %s42, %s58
    %p60 = scmp.eq.s32.totalorder %s20, 0
    %p61 = por %p59, %p60
    %s62 = ssub.s32 %s21, %s33
    %s63 = ssub.s32 %s22, %s29
    %s64 = sor.u32 %s62, %s63
    %p65 = scmp.eq.s32.totalorder %s64, 0
    %s67 = sadd.s32 %s66, 1
    %s68 = scalar_select %p65, %s66, %s67
    %p71 = pneg %p65
    %p72 = scmp.eq.s32.totalorder %s14, 1
    %p73 = por %p71, %p72
    %p74 = scmp.ne.s32.totalorder %s66, %s69
    %p75 = scmp.eq.s32.totalorder %s14, 0
    %p76 = por %p74, %p75
    %p77 = scmp.ne.s32.totalorder %s66, %s69
    %p78 = scmp.eq.s32.totalorder %s19, 1
    %p79 = por %p77, %p78
    %p80 = scmp.ne.s32.totalorder %s69, %s70
    %p81 = scmp.eq.s32.totalorder %s19, 0
    %p82 = por %p80, %p81
    %p83 = scmp.ne.s32.totalorder %s69, %s70
    %p84 = scmp.eq.s32.totalorder %s20, 1
    %p85 = por %p83, %p84
    %p87 = scmp.ne.s32.totalorder %s70, %s86
    %p88 = scmp.eq.s32.totalorder %s20, 0
    %p89 = por %p87, %p88
    %p90 = scmp.le.s32.totalorder 1, %s14
    %p91 = scmp.lt.s32.totalorder %s14, 3
    %p92 = pnand %p90, %p91
    %p93 = pneg %p92
    // Predicated region
    $region9: #{_drop_path_train.1} parent=5 // pred_check
      _
    $region10: #{_drop_path_train.1} parent=5 // pred_check_branch
      %95 = sbr.rel (%p92) target = $region12
    $region11: #{_drop_path_train.1} parent=5 // pred_region
      %s96 = ssub.s32 %s14, 1
    $region12: #{_drop_path_train.1} parent=5 // pred_fallthru
      _
    %p97 = scmp.lt.s32.totalorder %s14, 2
    // Predicated region
    $region13: #{_drop_path_train.1} parent=5 // pred_check
      %p98 = pneg %p97
    $region14: #{_drop_path_train.1} parent=5 // pred_check_branch
      %100 = sbr.rel (%p98) target = $region16
    $region15: #{_drop_path_train.1} parent=5 // pred_region
      // Predicated region
      $region17: #{_drop_path_train.1} parent=15 // pred_check
        %p101 = pneg %p48
      $region18: #{_drop_path_train.1} parent=15 // pred_check_branch
        %103 = sbr.rel (%p101) target = $region20
      $region19: #{_drop_path_train.1} parent=15 // pred_region
        %p104 = scmp.lt.s32.totalorder %s21, 1
        %s105 = scalar_select %p104, %s21, 1
        %p106 = scmp.lt.s32.totalorder %s22, 0
        %s107 = scalar_select %p106, %s22, 0
        %s108 = smul.addr %s107, 2
        %s109 = smul.addr %s105, 2
        %s110 = sadd.s32 %s108, %s109
        %s111 = scalar_lea.vmem %s1, %s110
      $region20: #{_drop_path_train.1} parent=15 // pred_fallthru
        _
    $region16: #{_drop_path_train.1} parent=5 // pred_fallthru
      _
    %p112 = scmp.le.s32.totalorder 1, %s14
    %p113 = scmp.lt.s32.totalorder %s14, 3
    %p114 = pnand %p112, %p113
    %p115 = pneg %p114
    // Predicated region
    $region21: #{_drop_path_train.1} parent=5 // pred_check
      _
    $region22: #{_drop_path_train.1} parent=5 // pred_check_branch
      %117 = sbr.rel (%p114) target = $region24
    $region23: #{_drop_path_train.1} parent=5 // pred_region
      %s118 = ssub.s32 %s14, 1
      %p119 = scmp.lt.s32.totalorder %s23, 1
      %s120 = scalar_select %p119, %s23, 1
      %p121 = scmp.lt.s32.totalorder %s24, 0
      %s122 = scalar_select %p121, %s24, 0
      %s123 = smul.addr %s122, 2
      %s124 = smul.addr %s120, 2
      %s125 = sadd.s32 %s123, %s124
      %s126 = scalar_lea.vmem %s1, %s125
      %p127 = pneg %p54
      %p128 = pneg %p51
      %p129 = pneg %p82
      %p130 = pneg %p79
      %p131 = scmp.lt.s32.totalorder %s23, 1
      %s132 = scalar_select %p131, %s23, 1
      %p133 = scmp.lt.s32.totalorder %s24, 0
      %s134 = scalar_select %p133, %s24, 0
      %s135 = smul.addr %s134, 2
      %s136 = smul.addr %s132, 2
      %s137 = sadd.s32 %s135, %s136
      %s138 = scalar_lea.vmem %s2, %s137
      %p139 = scmp.lt.s32.totalorder %s23, 1
      %s140 = scalar_select %p139, %s23, 1
      %p141 = scmp.lt.s32.totalorder %s24, 0
      %s142 = scalar_select %p141, %s24, 0
      %s143 = smul.addr %s142, 2
      %s144 = smul.addr %s140, 2
      %s145 = sadd.s32 %s143, %s144
      %s146 = scalar_lea.vmem %s1, %s145
      %p147 = scmp.lt.s32.totalorder %s23, 1
      %s148 = scalar_select %p147, %s23, 1
      %p149 = scmp.lt.s32.totalorder %s24, 0
      %s150 = scalar_select %p149, %s24, 0
      %s151 = smul.addr %s150, 2
      %s152 = smul.addr %s148, 2
      %s153 = sadd.s32 %s151, %s152
      %s154 = scalar_lea.vmem %s2, %s153
      %s155 = sld [smem:[#allocation3 + %s23]]
      %s156 = scvt.s32.f32 %s155
      %s157 = smul.f32 %s156, 1.3333334
      %v158 = vld [vmem:[%s146] sm:$0x3]
      %v159 = vstv %s157
      %v160 = vmul.f32 %v158, %v159
      %v161 = vlaneseq
      %vm162 = vcmp.ge.s32.totalorder %v161, 0
      %vm163 = vcmp.lt.s32.totalorder %v161, 256
      %vm164 = vmand %vm162, %vm163
      %165 = vst.msk [vmem:[%s154] sm:$0x3] %vm164, %v160
      %p166 = scmp.lt.s32.totalorder %s23, 1
      %s167 = scalar_select %p166, %s23, 1
      %p168 = scmp.lt.s32.totalorder %s24, 0
      %s169 = scalar_select %p168, %s24, 0
      %s170 = smul.addr %s169, 2
      %s171 = smul.addr %s167, 2
      %s172 = sadd.s32 %s170, %s171
      %s173 = scalar_lea.vmem %s2, %s172
      // Predicated region
      $region25: #{_drop_path_train.1} parent=23 // pred_check
        %p174 = pneg %p79
      $region26: #{_drop_path_train.1} parent=23 // pred_check_branch
        %176 = sbr.rel (%p174) target = $region28
      $region27: #{_drop_path_train.1} parent=23 // pred_region
        _
      $region28: #{_drop_path_train.1} parent=23 // pred_fallthru
        _
    $region24: #{_drop_path_train.1} parent=5 // pred_fallthru
      _
    %p177 = scmp.le.s32.totalorder 2, %s14
    // Predicated region
    $region29: #{_drop_path_train.1} parent=5 // pred_check
      %p178 = pneg %p177
    $region30: #{_drop_path_train.1} parent=5 // pred_check_branch
      %180 = sbr.rel (%p178) target = $region32
    $region31: #{_drop_path_train.1} parent=5 // pred_region
      %s181 = ssub.s32 %s14, 2
      // Predicated region
      $region33: #{_drop_path_train.1} parent=31 // pred_check
        %p182 = pneg %p85
      $region34: #{_drop_path_train.1} parent=31 // pred_check_branch
        %184 = sbr.rel (%p182) target = $region36
      $region35: #{_drop_path_train.1} parent=31 // pred_region
        %p185 = scmp.lt.s32.totalorder %s25, 1
        %s186 = scalar_select %p185, %s25, 1
        %p187 = scmp.lt.s32.totalorder %s26, 0
        %s188 = scalar_select %p187, %s26, 0
        %s189 = smul.addr %s188, 2
        %s190 = smul.addr %s186, 2
        %s191 = sadd.s32 %s189, %s190
        %s192 = scalar_lea.vmem %s2, %s191
      $region36: #{_drop_path_train.1} parent=31 // pred_fallthru
        _
    $region32: #{_drop_path_train.1} parent=5 // pred_fallthru
      _
  $region6: #{_drop_path_train.1} parent=0 // loop_footer
    %s18 = sadd.s32 1, %s14
  $region7: #{_drop_path_train.1} parent=0 // loop_footer_branch
    %13 = sbr.rel target = $region3
  $region8: #{_drop_path_train.1} parent=0 // loop_exit
    _

</llo_original>
